<compile_context>
chip_gen: v7x
topology: tpu7x:2x2x1
jax: 0.10.0
libtpu: 0.0.40
codegen_flags: <defaults>
</compile_context>

<pallas_src>
import functools

import jax
import jax.numpy as jnp
from jax.experimental import pallas as pl
from jax.experimental.pallas import tpu as pltpu

_BN_EPS = 1e-5

# VMEM working-set budget used to size the lane tile.  12 MiB stays under the tightest
# default scoped-VMEM limit of any generation (v5e: 16 MiB) while the explicit 32 MiB
# scoped limit below gives the compiler headroom on every chip (v7x physical is 64 MiB).
_VMEM_TILE_BUDGET = 12 * 1024 * 1024
_VMEM_LIMIT_BYTES = 32 * 1024 * 1024
_MAX_LANE_TILE = 65536      # hard cap; 32K-64K lanes amortizes the ~0.35us per-step overhead
_NUM_STAT_SHARDS = 2        # per-core partial sums for the stats passes (v7x megacore)


def _round_up(v, m):
    return -(-v // m) * m


def _stats1_kernel(x_ref, w1_ref, sum_ref, sumsq_ref, *, hw, tile, n_t_sh, need_mask):
    """Accumulate per-shard per-channel sum / sum-of-squares of y = W1 @ x."""
    @pl.when((pl.program_id(1) == 0) & (pl.program_id(2) == 0))
    def _():
        sum_ref[...] = jnp.zeros_like(sum_ref)
        sumsq_ref[...] = jnp.zeros_like(sumsq_ref)

    # x_ref: (C, T), w1_ref: (out_ch, C) -> y: (out_ch, T)
    y = jnp.dot(w1_ref[...], x_ref[...], preferred_element_type=jnp.float32)
    if need_mask:
        # Tail / dummy (clamped) tiles: out-of-bounds block data is undefined -> zero it
        # out of the statistics.
        tg = pl.program_id(0) * n_t_sh + pl.program_id(2)        # global HW-tile index
        col = tg * tile + jax.lax.broadcasted_iota(jnp.int32, y.shape, 1)
        y = jnp.where(col < hw, y, 0.0)
    sum_ref[...] += jnp.sum(y, axis=1, keepdims=True)
    sumsq_ref[...] += jnp.sum(y * y, axis=1, keepdims=True)


def _stats2_kernel(x_ref, w1_ref, s1_ref, t1_ref, w2_ref, sum_ref, sumsq_ref,
                   *, hw, tile, n_t_sh, need_mask, cdt):
    """Accumulate per-shard per-channel sum / sum-of-squares of z = W2 @ relu(bn1(W1 @ x))."""
    @pl.when((pl.program_id(1) == 0) & (pl.program_id(2) == 0))
    def _():
        sum_ref[...] = jnp.zeros_like(sum_ref)
        sumsq_ref[...] = jnp.zeros_like(sumsq_ref)

    y = jnp.dot(w1_ref[...], x_ref[...], preferred_element_type=jnp.float32)
    h = jnp.maximum(y * s1_ref[...] + t1_ref[...], 0.0)          # folded BN1 + ReLU
    if need_mask:
        tg = pl.program_id(0) * n_t_sh + pl.program_id(2)
        col = tg * tile + jax.lax.broadcasted_iota(jnp.int32, h.shape, 1)
        h = jnp.where(col < hw, h, 0.0)                          # zeroed cols -> zero z cols
    z = jnp.dot(w2_ref[...], h.astype(cdt), preferred_element_type=jnp.float32)
    sum_ref[...] += jnp.sum(z, axis=1, keepdims=True)
    sumsq_ref[...] += jnp.sum(z * z, axis=1, keepdims=True)


def _apply_kernel(x_ref, w1_ref, s1_ref, t1_ref, w2_ref, s2_ref, t2_ref, o_ref, *, cdt):
    """Final pass: recompute both convs, apply folded BN1/BN2 + ReLU, lane-dense store.

    No tail masking needed: the out-of-range columns of the last partial block are dropped
    by Pallas' masked write-back."""
    y = jnp.dot(w1_ref[...], x_ref[...], preferred_element_type=jnp.float32)
    h = jnp.maximum(y * s1_ref[...] + t1_ref[...], 0.0)
    z = jnp.dot(w2_ref[...], h.astype(cdt), preferred_element_type=jnp.float32)
    o_ref[...] = jnp.maximum(z * s2_ref[...] + t2_ref[...], 0.0).astype(o_ref.dtype)


def conv1x1_forward(x_nchw, params, *, vmem_tile_budget=_VMEM_TILE_BUDGET,
                    max_lane_tile=_MAX_LANE_TILE):
    """params = (w1, b1, g1, be1, w2, b2, g2, be2).
       w1: (out_ch, in_ch), w2: (out_ch, out_ch) (PyTorch 1x1 conv weight, k dims squeezed);
       b*, g*, be*: (out_ch,).  Conv biases are accepted but unused: under train-mode
       BatchNorm a constant per-channel bias is cancelled exactly by the mean subtraction."""
    w1, _b1, g1, be1, w2, _b2, g2, be2 = params
    N, C, H, W = x_nchw.shape
    out_ch, in_ch = w1.shape
    assert C == in_ch
    HW = H * W
    R = N * HW  # element count per channel for the BN statistics

    cdt = x_nchw.dtype                     # consume x in caller-supplied dtype (no extra pass)
    db = jnp.dtype(cdt).itemsize

    # ---- lane tile from a VMEM byte budget ------------------------------------------------
    per_lane = (2 * C * db                 # x block, double-buffered
                + 2 * out_ch * 4           # output block (apply pass), double-buffered
                + 4 * out_ch * 4)          # y / h / z f32 temporaries (conservative)
    tile = (vmem_tile_budget // per_lane) // 128 * 128
    tile = max(128, min(tile, max_lane_tile, _round_up(HW, 128)))
    n_t = pl.cdiv(HW, tile)

    shards = _NUM_STAT_SHARDS if n_t >= _NUM_STAT_SHARDS else 1
    n_t_sh = pl.cdiv(n_t, shards)
    # Mask needed if the last tile is partial or a shard has clamped "dummy" tiles.
    need_mask = (HW % tile != 0) or (shards * n_t_sh != n_t)

    x3 = x_nchw.reshape(N, C, HW)          # free reshape, no transpose, no pad
    w1c = w1.astype(cdt)
    w2c = w2.astype(cdt)

    # ---- specs ------------------------------------------------------------------------------
    def x_idx_stats(s, n, t):
        # Clamp dummy tiles (when shards*n_t_sh > n_t) onto the last valid block; their
        # contribution is fully masked to zero inside the kernel.
        return (n, 0, jnp.minimum(s * n_t_sh + t, n_t - 1))

    x_spec_s = pl.BlockSpec((None, C, tile), x_idx_stats)
    w1_spec_s = pl.BlockSpec((out_ch, in_ch), lambda s, n, t: (0, 0))
    w2_spec_s = pl.BlockSpec((out_ch, out_ch), lambda s, n, t: (0, 0))
    col_spec_s = pl.BlockSpec((out_ch, 1), lambda s, n, t: (0, 0))
    stat_out_spec = pl.BlockSpec((None, out_ch, 1), lambda s, n, t: (s, 0, 0))
    stat_shape = jax.ShapeDtypeStruct((shards, out_ch, 1), jnp.float32)

    cp_stats = pltpu.CompilerParams(
        dimension_semantics=("parallel", "arbitrary", "arbitrary"),
        vmem_limit_bytes=_VMEM_LIMIT_BYTES)
    cp_apply = pltpu.CompilerParams(
        dimension_semantics=("parallel", "parallel"),
        vmem_limit_bytes=_VMEM_LIMIT_BYTES)

    # ---- pass 1: stats of y = W1 @ x --------------------------------------------------------
    kern1 = functools.partial(_stats1_kernel, hw=HW, tile=tile, n_t_sh=n_t_sh,
                              need_mask=need_mask)
    s1_sum, s1_sq = pl.pallas_call(
        kern1,
        out_shape=(stat_shape, stat_shape),
        grid=(shards, N, n_t_sh),
        in_specs=[x_spec_s, w1_spec_s],
        out_specs=(stat_out_spec, stat_out_spec),
        compiler_params=cp_stats,
    )(x3, w1c)

    def fold_bn(sum_, sumsq_, gamma, beta):
        sum_ = jnp.sum(sum_, axis=0)            # combine per-core partials -> (out_ch, 1)
        sumsq_ = jnp.sum(sumsq_, axis=0)
        mean = sum_ / R
        var = jnp.maximum(sumsq_ / R - mean * mean, 0.0)   # biased var, as PyTorch train BN
        scale = gamma.reshape(out_ch, 1).astype(jnp.float32) * jax.lax.rsqrt(var + _BN_EPS)
        shift = beta.reshape(out_ch, 1).astype(jnp.float32) - mean * scale
        return scale, shift

    scale1, shift1 = fold_bn(s1_sum, s1_sq, g1, be1)

    # ---- pass 2: stats of z = W2 @ relu(bn1(y)) ---------------------------------------------
    kern2 = functools.partial(_stats2_kernel, hw=HW, tile=tile, n_t_sh=n_t_sh,
                              need_mask=need_mask, cdt=cdt)
    s2_sum, s2_sq = pl.pallas_call(
        kern2,
        out_shape=(stat_shape, stat_shape),
        grid=(shards, N, n_t_sh),
        in_specs=[x_spec_s, w1_spec_s, col_spec_s, col_spec_s, w2_spec_s],
        out_specs=(stat_out_spec, stat_out_spec),
        compiler_params=cp_stats,
    )(x3, w1c, scale1, shift1, w2c)

    scale2, shift2 = fold_bn(s2_sum, s2_sq, g2, be2)

    # ---- pass 3: apply everything, lane-dense output (no padded columns, no wrapper slice) --
    x_spec_a = pl.BlockSpec((None, C, tile), lambda n, t: (n, 0, t))
    w1_spec_a = pl.BlockSpec((out_ch, in_ch), lambda n, t: (0, 0))
    w2_spec_a = pl.BlockSpec((out_ch, out_ch), lambda n, t: (0, 0))
    col_spec_a = pl.BlockSpec((out_ch, 1), lambda n, t: (0, 0))
    out_spec_a = pl.BlockSpec((None, out_ch, tile), lambda n, t: (n, 0, t))

    kern3 = functools.partial(_apply_kernel, cdt=cdt)
    out3 = pl.pallas_call(
        kern3,
        out_shape=jax.ShapeDtypeStruct((N, out_ch, HW), x_nchw.dtype),
        grid=(N, n_t),
        in_specs=[x_spec_a, w1_spec_a, col_spec_a, col_spec_a, w2_spec_a,
                  col_spec_a, col_spec_a],
        out_specs=out_spec_a,
        compiler_params=cp_apply,
    )(x3, w1c, scale1, shift1, w2c, scale2, shift2)

    return out3.reshape(N, out_ch, H, W)          # free reshape, no transpose


def init_params(key, in_ch, out_ch):
    """Deterministic synthetic init mirroring the PyTorch module's shapes/defaults."""
    k1, k2, k3, k4 = jax.random.split(key, 4)
    bound1 = 1.0 / (in_ch ** 0.5)    # conv1 fan_in = in_ch * 1 * 1
    bound2 = 1.0 / (out_ch ** 0.5)   # conv2 fan_in = out_ch * 1 * 1
    w1 = jax.random.uniform(k1, (out_ch, in_ch), jnp.float32, -bound1, bound1)
    b1 = jax.random.uniform(k2, (out_ch,), jnp.float32, -bound1, bound1)
    w2 = jax.random.uniform(k3, (out_ch, out_ch), jnp.float32, -bound2, bound2)
    b2 = jax.random.uniform(k4, (out_ch,), jnp.float32, -bound2, bound2)
    g1 = jnp.ones((out_ch,), jnp.float32)
    be1 = jnp.zeros((out_ch,), jnp.float32)
    g2 = jnp.ones((out_ch,), jnp.float32)
    be2 = jnp.zeros((out_ch,), jnp.float32)
    return (w1, b1, g1, be1, w2, b2, g2, be2)


def _reference(x_nchw, params):
    """Pure-JAX reference of the PyTorch forward (train-mode BN, biases included)."""
    w1, b1, g1, be1, w2, b2, g2, be2 = params
    N, C, H, W = x_nchw.shape
    x = x_nchw.reshape(N, C, H * W)

    def block(x, w, b, g, be):
        y = jnp.einsum('oi,nis->nos', w, x) + b[None, :, None]
        m = jnp.mean(y, axis=(0, 2), keepdims=True)
        v = jnp.mean((y - m) ** 2, axis=(0, 2), keepdims=True)
        y = (y - m) / jnp.sqrt(v + _BN_EPS) * g[None, :, None] + be[None, :, None]
        return jnp.maximum(y, 0.0)

    y = block(x, w1, b1, g1, be1)
    y = block(y, w2, b2, g2, be2)
    return y.reshape(N, -1, H, W)


if __name__ == "__main__":
    key = jax.random.PRNGKey(0)
    kx, kp = jax.random.split(key)

    N, in_ch, out_ch, H, W = 2, 4, 8, 16, 16
    x = jax.random.normal(kx, (N, in_ch, H, W), jnp.float32)
    params = init_params(kp, in_ch, out_ch)

    out = conv1x1_forward(x, params)
    out = jax.block_until_ready(out)

    ref = _reference(x, params)
    assert out.shape == (N, out_ch, H, W)
    assert jnp.allclose(out, ref, atol=2e-4, rtol=2e-4), "mismatch vs reference"

    print("KERNEL_OK")
</pallas_src>

<mosaic_0001>
module attributes {stable_mosaic.version = 11 : i64} {
  func.func @_stats1_kernel(%arg0: i32, %arg1: i32, %arg2: i32, %arg3: memref<1x4x256xf32, #tpu.memory_space<vmem>>, %arg4: memref<8x4xf32, #tpu.memory_space<vmem>>, %arg5: memref<1x8x1xf32, #tpu.memory_space<vmem>>, %arg6: memref<1x8x1xf32, #tpu.memory_space<vmem>>) attributes {dimension_semantics = [#tpu.dimension_semantics<parallel>, #tpu.dimension_semantics<arbitrary>, #tpu.dimension_semantics<arbitrary>], iteration_bounds = array<i64: 1, 2, 1>, scalar_prefetch = 0 : i64, scratch_operands = 0 : i64, tpu.core_type = #tpu.core_type<tc>, window_params = [{transform_indices = @transform_0, window_bounds = array<i64: 1, 4, 256>}, {pipeline_mode = #tpu.pipeline_mode<synchronous>, transform_indices = @transform_1, window_bounds = array<i64: 8, 4>}, {transform_indices = @transform_2, window_bounds = array<i64: 1, 8, 1>}, {transform_indices = @transform_3, window_bounds = array<i64: 1, 8, 1>}]} {
    %c0_i32 = arith.constant 0 : i32
    %0 = arith.cmpi eq, %arg1, %c0_i32 : i32
    %c0_i32_0 = arith.constant 0 : i32
    %1 = arith.cmpi eq, %arg2, %c0_i32_0 : i32
    %2 = arith.andi %0, %1 : i1
    %3 = arith.extui %2 : i1 to i32
    %c0_i32_1 = arith.constant 0 : i32
    %4 = arith.cmpi ne, %3, %c0_i32_1 : i32
    scf.if %4 {
      %cst_20 = arith.constant 0.000000e+00 : f32
      %26 = vector.broadcast %cst_20 : f32 to vector<8x1xf32>
      %c0_21 = arith.constant 0 : index
      %c0_22 = arith.constant 0 : index
      %c0_23 = arith.constant 0 : index
      %27 = vector.load %arg5[%c0_21, %c0_22, %c0_23] : memref<1x8x1xf32, #tpu.memory_space<vmem>>, vector<1x8x1xf32>
      %28 = vector.shape_cast %27 : vector<1x8x1xf32> to vector<8x1xf32>
      %29 = vector.shape_cast %26 : vector<8x1xf32> to vector<1x8x1xf32>
      tpu.vector_store %arg5[%c0_21, %c0_22, %c0_23], %29 {strides = array<i32>} : memref<1x8x1xf32, #tpu.memory_space<vmem>>, vector<1x8x1xf32>,
      %cst_24 = arith.constant 0.000000e+00 : f32
      %30 = vector.broadcast %cst_24 : f32 to vector<8x1xf32>
      %c0_25 = arith.constant 0 : index
      %c0_26 = arith.constant 0 : index
      %c0_27 = arith.constant 0 : index
      %31 = vector.load %arg6[%c0_25, %c0_26, %c0_27] : memref<1x8x1xf32, #tpu.memory_space<vmem>>, vector<1x8x1xf32>
      %32 = vector.shape_cast %31 : vector<1x8x1xf32> to vector<8x1xf32>
      %33 = vector.shape_cast %30 : vector<8x1xf32> to vector<1x8x1xf32>
      tpu.vector_store %arg6[%c0_25, %c0_26, %c0_27], %33 {strides = array<i32>} : memref<1x8x1xf32, #tpu.memory_space<vmem>>, vector<1x8x1xf32>,
    } else {
    }
    %c0 = arith.constant 0 : index
    %c0_2 = arith.constant 0 : index
    %5 = vector.load %arg4[%c0, %c0_2] : memref<8x4xf32, #tpu.memory_space<vmem>>, vector<8x4xf32>
    %c0_3 = arith.constant 0 : index
    %c0_4 = arith.constant 0 : index
    %c0_5 = arith.constant 0 : index
    %6 = vector.load %arg3[%c0_3, %c0_4, %c0_5] : memref<1x4x256xf32, #tpu.memory_space<vmem>>, vector<1x4x256xf32>
    %7 = vector.shape_cast %6 : vector<1x4x256xf32> to vector<4x256xf32>
    %cst = arith.constant dense<0.000000e+00> : vector<8x256xf32>
    %8 = tpu.matmul %5, %7, %cst {dimension_numbers = #tpu.dot_dimension_numbers<[1], [0], [0], [1], [0, 0, 1, 1], [], []>} : vector<8x4xf32>, vector<4x256xf32>, vector<8x256xf32> -> vector<8x256xf32>
    %c0_6 = arith.constant 0 : index
    %c0_7 = arith.constant 0 : index
    %c0_8 = arith.constant 0 : index
    %9 = vector.load %arg5[%c0_6, %c0_7, %c0_8] : memref<1x8x1xf32, #tpu.memory_space<vmem>>, vector<1x8x1xf32>
    %10 = vector.shape_cast %9 : vector<1x8x1xf32> to vector<8x1xf32>
    %cst_9 = arith.constant dense<0.000000e+00> : vector<8xf32>
    %11 = vector.multi_reduction <add>, %8, %cst_9 [1] : vector<8x256xf32> to vector<8xf32>
    %12 = vector.shape_cast %11 : vector<8xf32> to vector<8x1xf32>
    %13 = arith.addf %10, %12 : vector<8x1xf32>
    %c0_10 = arith.constant 0 : index
    %c0_11 = arith.constant 0 : index
    %c0_12 = arith.constant 0 : index
    %14 = vector.load %arg5[%c0_10, %c0_11, %c0_12] : memref<1x8x1xf32, #tpu.memory_space<vmem>>, vector<1x8x1xf32>
    %15 = vector.shape_cast %14 : vector<1x8x1xf32> to vector<8x1xf32>
    %16 = vector.shape_cast %13 : vector<8x1xf32> to vector<1x8x1xf32>
    tpu.vector_store %arg5[%c0_10, %c0_11, %c0_12], %16 {strides = array<i32>} : memref<1x8x1xf32, #tpu.memory_space<vmem>>, vector<1x8x1xf32>,
    %c0_13 = arith.constant 0 : index
    %c0_14 = arith.constant 0 : index
    %c0_15 = arith.constant 0 : index
    %17 = vector.load %arg6[%c0_13, %c0_14, %c0_15] : memref<1x8x1xf32, #tpu.memory_space<vmem>>, vector<1x8x1xf32>
    %18 = vector.shape_cast %17 : vector<1x8x1xf32> to vector<8x1xf32>
    %19 = arith.mulf %8, %8 : vector<8x256xf32>
    %cst_16 = arith.constant dense<0.000000e+00> : vector<8xf32>
    %20 = vector.multi_reduction <add>, %19, %cst_16 [1] : vector<8x256xf32> to vector<8xf32>
    %21 = vector.shape_cast %20 : vector<8xf32> to vector<8x1xf32>
    %22 = arith.addf %18, %21 : vector<8x1xf32>
    %c0_17 = arith.constant 0 : index
    %c0_18 = arith.constant 0 : index
    %c0_19 = arith.constant 0 : index
    %23 = vector.load %arg6[%c0_17, %c0_18, %c0_19] : memref<1x8x1xf32, #tpu.memory_space<vmem>>, vector<1x8x1xf32>
    %24 = vector.shape_cast %23 : vector<1x8x1xf32> to vector<8x1xf32>
    %25 = vector.shape_cast %22 : vector<8x1xf32> to vector<1x8x1xf32>
    tpu.vector_store %arg6[%c0_17, %c0_18, %c0_19], %25 {strides = array<i32>} : memref<1x8x1xf32, #tpu.memory_space<vmem>>, vector<1x8x1xf32>,
    return
  }
  func.func @transform_0(%arg0: i32, %arg1: i32, %arg2: i32) -> (i32, i32, i32) {
    %c1_i32 = arith.constant 1 : i32
    %0 = arith.muli %arg0, %c1_i32 : i32
    %1 = arith.addi %0, %arg2 : i32
    %c0_i32 = arith.constant 0 : i32
    %2 = arith.minsi %1, %c0_i32 : i32
    %c0_i32_0 = arith.constant 0 : i32
    %c0_i32_1 = arith.constant 0 : i32
    return %arg1, %c0_i32_0, %2 : i32, i32, i32
  }
  func.func @transform_1(%arg0: i32, %arg1: i32, %arg2: i32) -> (i32, i32) {
    %c0_i32 = arith.constant 0 : i32
    %c0_i32_0 = arith.constant 0 : i32
    %c0_i32_1 = arith.constant 0 : i32
    return %c0_i32, %c0_i32_0 : i32, i32
  }
  func.func @transform_2(%arg0: i32, %arg1: i32, %arg2: i32) -> (i32, i32, i32) {
    %c0_i32 = arith.constant 0 : i32
    %c0_i32_0 = arith.constant 0 : i32
    %c0_i32_1 = arith.constant 0 : i32
    return %arg0, %c0_i32, %c0_i32_0 : i32, i32, i32
  }
  func.func @transform_3(%arg0: i32, %arg1: i32, %arg2: i32) -> (i32, i32, i32) {
    %c0_i32 = arith.constant 0 : i32
    %c0_i32_0 = arith.constant 0 : i32
    %c0_i32_1 = arith.constant 0 : i32
    return %arg0, %c0_i32, %c0_i32_0 : i32, i32, i32
  }
}

</mosaic_0001>

<llo_original>
// kernel: tpu_custom_call.1
$region0: #{tpu_custom_call.1}
  #allocation0 [shape = 'u32[]', space=smem, size = 0x4, offset = 0x4, fixed_abs, tag = 'smem constant byte address 0x4 - core index']
  #allocation1 [shape = 'u32[144,128]{1,0:T(1,128)}', space=vmem, size = 0x12000, scoped, tag = 'internal scratch']
  %s0 = inlined_call_operand.hbm [shape: f32[2,4,256], index: 0, kind: input, shape index: {}]
  %s1 = inlined_call_operand.vmem [shape: f32[8,4], index: 1, kind: input, shape index: {}]
  %s2 = inlined_call_operand.vmem [shape: f32[1,8,1], index: 2, kind: output, shape index: {0}]
  %s3 = inlined_call_operand.vmem [shape: f32[1,8,1], index: 3, kind: output, shape index: {1}]
  %4 = xla_tuple %s2, %s3
  %s5 = sld [smem:[#allocation0]]
  $region57: #{tpu_custom_call.1} parent=0
    _
  %s7 = ssub.s32 1, %s5
  %s8 = scalar_select 0, %s7, %s5
  $region1: #{tpu_custom_call.1} parent=0
    #allocation2 [shape = 'u8[8192]{0}', space=vmem, size = 0x2000, scoped, tag = 'input window, operand 0']
    #allocation3 [shape = 's32[2]{0}', space=sflag, size = 0x8, scoped, tag = 'scoped memory for tpu_custom_call.1']
    %9 = vsyncpa [#allocation3], 0
    %s10 = scalar_lea.sflag [#allocation3], 1
    %11 = vsyncpa %s10, 0
    loop: start=0, step=1, limit=4
    $region2: #{tpu_custom_call.1} parent=1 // loop_pre_header
      _
    $region3: #{tpu_custom_call.1} parent=1 // loop_header
      %s13 = sphi 0, %s17
      %p14 = scmp.ge.s32.totalorder %s13, 4
      %s20 = sphi 0, %s39
      %s21 = sphi 0, %s35
      %s22 = sphi 0, %s31
      %s23 = sphi 0, %s20
      %s24 = sphi 0, %s21
      %s25 = sphi 0, %s22
      %s26 = sphi 0, %s23
      %s27 = sphi 0, %s24
      %s28 = sphi 0, %s25
      %s50 = sphi 0, %s52
      %s53 = sphi 0, %s50
      %s54 = sphi 0, %s53
      %s70 = sphi 0, %s54
      %s74 = sphi 0, %s74
      %s76 = sphi 0, %s74
      %s77 = sphi 0, %s76
      %s91 = sphi 0, %s77
      %s97 = sphi 0, %s99
      %s100 = sphi 0, %s97
      %s101 = sphi 0, %s100
      %s117 = sphi 0, %s101
      %s123 = sphi 0, %s125
      %s126 = sphi 0, %s123
      %s127 = sphi 0, %s126
      %s143 = sphi 0, %s127
    $region4: #{tpu_custom_call.1} parent=1 // loop_header_branch
      %16 = sbr.rel (%p14) target = $region8
    $region5: #{tpu_custom_call.1} parent=1 // loop_body
      %s18 = ssub.s32 %s13, 1
      %s19 = ssub.s32 %s13, 2
      %s29 = sadd.s32 1, %s22
      %p30 = scmp.ge.s32.totalorder %s29, 1
      %s31 = scalar_select %p30, 0, %s29
      %s32 = sadd.s32 1, %s21
      %s33 = scalar_select %p30, %s32, %s21
      %p34 = scmp.ge.s32.totalorder %s33, 2
      %s35 = scalar_select %p34, 0, %s33
      %s36 = sadd.s32 1, %s20
      %s37 = scalar_select %p34, %s36, %s20
      %p38 = scmp.ge.s32.totalorder %s37, 1
      %s39 = scalar_select %p38, 0, %s37
      %s40 = sadd.s32 %s20, %s22
      %p41 = scmp.lt.s32.totalorder %s40, 0
      %s42 = scalar_select %p41, %s40, 0
      %s43 = sadd.s32 %s39, %s31
      %p44 = scmp.lt.s32.totalorder %s43, 0
      %s45 = scalar_select %p44, %s43, 0
      %s46 = ssub.s32 %s21, %s35
      %s47 = ssub.s32 %s42, %s45
      %s48 = sor.u32 %s46, %s47
      %p49 = scmp.eq.s32.totalorder %s48, 0
      %s51 = sadd.s32 %s50, 1
      %s52 = scalar_select %p49, %s50, %s51
      %p55 = pneg %p49
      %p56 = scmp.eq.s32.totalorder %s13, 1
      %p57 = por %p55, %p56
      %p58 = scmp.ne.s32.totalorder %s50, %s53
      %p59 = scmp.eq.s32.totalorder %s13, 0
      %p60 = por %p58, %p59
      %p61 = scmp.ne.s32.totalorder %s50, %s53
      %p62 = scmp.eq.s32.totalorder %s18, 1
      %p63 = por %p61, %p62
      %p64 = scmp.ne.s32.totalorder %s53, %s54
      %p65 = scmp.eq.s32.totalorder %s18, 0
      %p66 = por %p64, %p65
      %p67 = scmp.ne.s32.totalorder %s53, %s54
      %p68 = scmp.eq.s32.totalorder %s19, 1
      %p69 = por %p67, %p68
      %p71 = scmp.ne.s32.totalorder %s54, %s70
      %p72 = scmp.eq.s32.totalorder %s19, 0
      %p73 = por %p71, %p72
      %s75 = sadd.s32 %s74, 1
      %p78 = scmp.eq.s32.totalorder %s13, 1
      %p79 = scmp.ne.s32.totalorder %s74, %s76
      %p80 = scmp.eq.s32.totalorder %s13, 0
      %p81 = por %p79, %p80
      %p82 = scmp.ne.s32.totalorder %s74, %s76
      %p83 = scmp.eq.s32.totalorder %s18, 1
      %p84 = por %p82, %p83
      %p85 = scmp.ne.s32.totalorder %s76, %s77
      %p86 = scmp.eq.s32.totalorder %s18, 0
      %p87 = por %p85, %p86
      %p88 = scmp.ne.s32.totalorder %s76, %s77
      %p89 = scmp.eq.s32.totalorder %s19, 1
      %p90 = por %p88, %p89
      %p92 = scmp.ne.s32.totalorder %s77, %s91
      %p93 = scmp.eq.s32.totalorder %s19, 0
      %p94 = por %p92, %p93
      %s95 = ssub.s32 %s20, %s39
      %p96 = scmp.eq.s32.totalorder %s95, 0
      %s98 = sadd.s32 %s97, 1
      %s99 = scalar_select %p96, %s97, %s98
      %p102 = pneg %p96
      %p103 = scmp.eq.s32.totalorder %s13, 1
      %p104 = por %p102, %p103
      %p105 = scmp.ne.s32.totalorder %s97, %s100
      %p106 = scmp.eq.s32.totalorder %s13, 0
      %p107 = por %p105, %p106
      %p108 = scmp.ne.s32.totalorder %s97, %s100
      %p109 = scmp.eq.s32.totalorder %s18, 1
      %p110 = por %p108, %p109
      %p111 = scmp.ne.s32.totalorder %s100, %s101
      %p112 = scmp.eq.s32.totalorder %s18, 0
      %p113 = por %p111, %p112
      %p114 = scmp.ne.s32.totalorder %s100, %s101
      %p115 = scmp.eq.s32.totalorder %s19, 1
      %p116 = por %p114, %p115
      %p118 = scmp.ne.s32.totalorder %s101, %s117
      %p119 = scmp.eq.s32.totalorder %s19, 0
      %p120 = por %p118, %p119
      %s121 = ssub.s32 %s20, %s39
      %p122 = scmp.eq.s32.totalorder %s121, 0
      %s124 = sadd.s32 %s123, 1
      %s125 = scalar_select %p122, %s123, %s124
      %p128 = pneg %p122
      %p129 = scmp.eq.s32.totalorder %s13, 1
      %p130 = por %p128, %p129
      %p131 = scmp.ne.s32.totalorder %s123, %s126
      %p132 = scmp.eq.s32.totalorder %s13, 0
      %p133 = por %p131, %p132
      %p134 = scmp.ne.s32.totalorder %s123, %s126
      %p135 = scmp.eq.s32.totalorder %s18, 1
      %p136 = por %p134, %p135
      %p137 = scmp.ne.s32.totalorder %s126, %s127
      %p138 = scmp.eq.s32.totalorder %s18, 0
      %p139 = por %p137, %p138
      %p140 = scmp.ne.s32.totalorder %s126, %s127
      %p141 = scmp.eq.s32.totalorder %s19, 1
      %p142 = por %p140, %p141
      %p144 = scmp.ne.s32.totalorder %s127, %s143
      %p145 = scmp.eq.s32.totalorder %s19, 0
      %p146 = por %p144, %p145
      %p147 = scmp.le.s32.totalorder 1, %s13
      %p148 = scmp.lt.s32.totalorder %s13, 3
      %p149 = pnand %p147, %p148
      %p150 = pneg %p149
      // Predicated region
      $region9: #{tpu_custom_call.1} parent=5 // pred_check
        _
      $region10: #{tpu_custom_call.1} parent=5 // pred_check_branch
        %152 = sbr.rel (%p149) target = $region12
      $region11: #{tpu_custom_call.1} parent=5 // pred_region
        %s153 = ssub.s32 %s13, 1
        // Predicated region
        $region13: #{tpu_custom_call.1} parent=11 // pred_check
          %p154 = pneg %p87
        $region14: #{tpu_custom_call.1} parent=11 // pred_check_branch
          %156 = sbr.rel (%p154) target = $region16
        $region15: #{tpu_custom_call.1} parent=11 // pred_region
          _
        $region16: #{tpu_custom_call.1} parent=11 // pred_fallthru
          _
      $region12: #{tpu_custom_call.1} parent=5 // pred_fallthru
        _
      %p157 = scmp.lt.s32.totalorder %s13, 2
      // Predicated region
      $region17: #{tpu_custom_call.1} parent=5 // pred_check
        %p158 = pneg %p157
      $region18: #{tpu_custom_call.1} parent=5 // pred_check_branch
        %160 = sbr.rel (%p158) target = $region20
      $region19: #{tpu_custom_call.1} parent=5 // pred_region
        // Predicated region
        $region21: #{tpu_custom_call.1} parent=19 // pred_check
          %p161 = pneg %p60
        $region22: #{tpu_custom_call.1} parent=19 // pred_check_branch
          %163 = sbr.rel (%p161) target = $region24
        $region23: #{tpu_custom_call.1} parent=19 // pred_region
          %s164 = sand.u32 %s50, 1
          %s165 = scalar_lea.sflag [#allocation3], %s164
          %s166 = sand.u32 %s50, 1
          %s167 = smul.addr %s166, 8
          %s168 = scalar_lea.vmem [#allocation2], %s167
          %s169 = sadd.s32 %s20, %s22
          %p170 = scmp.lt.s32.totalorder %s169, 0
          %s171 = scalar_select %p170, %s169, 0
          %s172 = smul.u32 2, %s171
          %s174 = ssub.s32 128, 128
          %175 = vsyncadd %s165, %s174
          %s176 = smul.addr %s21, 2
          %s177 = sadd.s32 %s172, %s176
          %s178 = smul.addr %s177, 64
          %s179 = scalar_lea.hbm %s0, %s178
          %s181 = sshll.u32 %s168, 4
          %s182 = int_to_ptr.vmem [resolvable:$true] %s181
          %184 = dma.hbm_to_vmem [thread:$0]  %s179, 128, %s182, %s165
        $region24: #{tpu_custom_call.1} parent=19 // pred_fallthru
          _
      $region20: #{tpu_custom_call.1} parent=5 // pred_fallthru
        _
      %p185 = scmp.le.s32.totalorder 1, %s13
      %p186 = scmp.lt.s32.totalorder %s13, 3
      %p187 = pnand %p185, %p186
      %p188 = pneg %p187
      // Predicated region
      $region25: #{tpu_custom_call.1} parent=5 // pred_check
        _
      $region26: #{tpu_custom_call.1} parent=5 // pred_check_branch
        %190 = sbr.rel (%p187) target = $region28
      $region27: #{tpu_custom_call.1} parent=5 // pred_region
        %s191 = ssub.s32 %s13, 1
        %s192 = sand.u32 %s53, 1
        %s193 = scalar_lea.sflag [#allocation3], %s192
        %s194 = sand.u32 %s53, 1
        %s195 = smul.addr %s194, 8
        %s196 = scalar_lea.vmem [#allocation2], %s195
        // Predicated region
        $region29: #{tpu_custom_call.1} parent=27 // pred_check
          %p197 = pneg %p66
        $region30: #{tpu_custom_call.1} parent=27 // pred_check_branch
          %199 = sbr.rel (%p197) target = $region32
        $region31: #{tpu_custom_call.1} parent=27 // pred_region
          %200 = dma.done %s193, 128
        $region32: #{tpu_custom_call.1} parent=27 // pred_fallthru
          _
        %s201 = sand.u32 %s53, 1
        %s202 = scalar_lea.sflag [#allocation3], %s201
        %s203 = sand.u32 %s53, 1
        %s204 = smul.addr %s203, 8
        %s205 = scalar_lea.vmem [#allocation2], %s204
        %p206 = pneg %p66
        %p207 = pneg %p63
        %p208 = pneg %p87
        %p209 = pneg %p84
        %p210 = pneg %p113
        %p211 = pneg %p110
        %p212 = scmp.lt.s32.totalorder %s23, 0
        %s213 = scalar_select %p212, %s23, 0
        %s214 = smul.addr %s213, 8
        %s215 = scalar_lea.vmem %s2, %s214
        %p216 = pneg %p139
        %p217 = pneg %p136
        %p218 = scmp.lt.s32.totalorder %s23, 0
        %s219 = scalar_select %p218, %s23, 0
        %s220 = smul.addr %s219, 8
        %s221 = scalar_lea.vmem %s3, %s220
        %s222 = sadd.s32 %s23, %s25
        %p223 = scmp.lt.s32.totalorder %s222, 0
        %s224 = scalar_select %p223, %s222, 0
        %s225 = smul.u32 2, %s224
        %p226 = scmp.lt.s32.totalorder %s23, 0
        %s227 = scalar_select %p226, %s23, 0
        %s228 = smul.addr %s227, 8
        %s229 = scalar_lea.vmem %s2, %s228
        %p230 = scmp.lt.s32.totalorder %s23, 0
        %s231 = scalar_select %p230, %s23, 0
        %s232 = smul.addr %s231, 8
        %s233 = scalar_lea.vmem %s3, %s232
        %p234 = scmp.eq.s32.totalorder %s24, 0
        %p235 = scmp.eq.s32.totalorder %s25, 0
        %p236 = pnand %p234, %p235
        %p237 = pneg %p236
        // Predicated region
        $region33: #{tpu_custom_call.1} parent=27 // pred_check
          _
        $region34: #{tpu_custom_call.1} parent=27 // pred_check_branch
          %239 = sbr.rel (%p236) target = $region36
        $region35: #{tpu_custom_call.1} parent=27 // pred_region
          %vm240 = vcmask 7168
          %241 = vst.msk [vmem:[%s229] sm:$0xff] %vm240, 0.0
          %242 = vst.msk [vmem:[%s233] sm:$0xff] %vm240, 0.0
        $region36: #{tpu_custom_call.1} parent=27 // pred_fallthru
          _
        %v243 = vld [vmem:[%s1] sm:$0xff]
        %v244 = vld [vmem:[%s196] sm:$0xff]
        %v246 = vcombine.high %v244, %v244
        %vm247 = vcmask 31744
        %v249 = vsel %vm247, %v243, 0
        %vm251 = vcmask 1043456
        %v252 = vsel %vm251, %v244, 0
        %v254 = vsel %vm251, %v246, 0
        %256 = vmatprep.subr.mxu0 %v254
        %257 = vmatpush1.msra.mxu0 %v252
        %258 = vmatprep.subr.mxu0 0.0
        %259 = vmatpush1.msra.mxu0 0.0
        %260 = vmatprep.subr.mxu0 0.0
        %261 = vmatpush1.msra.mxu0 0.0
        %262 = vmatprep.subr.mxu0 0.0
        %263 = vmatpush1.msra.mxu0 0.0
        %264 = vmatprep.subr.mxu0 0.0
        %265 = vmatpush1.msra.mxu0 0.0
        %266 = vmatprep.subr.mxu0 0.0
        %267 = vmatpush1.msra.mxu0 0.0
        %268 = vmatprep.subr.mxu0 0.0
        %269 = vmatpush1.msra.mxu0 0.0
        %270 = vmatprep.subr.mxu0 0.0
        %271 = vmatpush1.msra.mxu0 0.0
        %272 = vmatprep.subr.mxu0 0.0
        %273 = vmatpush1.msra.mxu0 0.0
        %274 = vmatprep.subr.mxu0 0.0
        %275 = vmatpush1.msra.mxu0 0.0
        %276 = vmatprep.subr.mxu0 0.0
        %277 = vmatpush1.msra.mxu0 0.0
        %278 = vmatprep.subr.mxu0 0.0
        %279 = vmatpush1.msra.mxu0 0.0
        %280 = vmatprep.subr.mxu0 0.0
        %281 = vmatpush1.msra.mxu0 0.0
        %282 = vmatprep.subr.mxu0 0.0
        %283 = vmatpush1.msra.mxu0 0.0
        %284 = vmatprep.subr.mxu0 0.0
        %285 = vmatpush1.msra.mxu0 0.0
        %286 = vmatprep.subr.mxu0 0.0
        %287 = vmatpush1.msra.mxu0 0.0
        %288 = vmatprep.subr.mxu0 0.0
        %289 = vmatpush1.msra.mxu0 0.0
        %290 = vmatprep.subr.mxu0 0.0
        %291 = vmatpush1.msra.mxu0 0.0
        %292 = vmatprep.subr.mxu0 0.0
        %293 = vmatpush1.msra.mxu0 0.0
        %294 = vmatprep.subr.mxu0 0.0
        %295 = vmatpush1.msra.mxu0 0.0
        %296 = vmatprep.subr.mxu0 0.0
        %297 = vmatpush1.msra.mxu0 0.0
        %298 = vmatprep.subr.mxu0 0.0
        %299 = vmatpush1.msra.mxu0 0.0
        %300 = vmatprep.subr.mxu0 0.0
        %301 = vmatpush1.msra.mxu0 0.0
        %302 = vmatprep.subr.mxu0 0.0
        %303 = vmatpush1.msra.mxu0 0.0
        %304 = vmatprep.subr.mxu0 0.0
        %305 = vmatpush1.msra.mxu0 0.0
        %306 = vmatprep.subr.mxu0 0.0
        %307 = vmatpush1.msra.mxu0 0.0
        %308 = vmatprep.subr.mxu0 0.0
        %309 = vmatpush1.msra.mxu0 0.0
        %310 = vmatprep.subr.mxu0 0.0
        %311 = vmatpush1.msra.mxu0 0.0
        %312 = vmatprep.subr.mxu0 0.0
        %313 = vmatpush1.msra.mxu0 0.0
        %314 = vmatprep.subr.mxu0 0.0
        %315 = vmatpush1.msra.mxu0 0.0
        %316 = vmatprep.subr.mxu0 0.0
        %317 = vmatpush1.msra.mxu0 0.0
        %318 = vmatprep.subr.mxu0 0.0
        %319 = vmatpush1.msra.mxu0 0.0
        %320 = vmatprep.mubr.f32.mxu0 0.0
        %321 = vmatmul.mubr.f32.gmra.mrb[0].mxu0 %v249
        %v322 = vpop.f32.mrb[0].mxu0
        %v323 = vadd.f32 0.0, %v322
        %v324 = vpop.f32.mrb[0].mxu0
        %v325 = vadd.f32 0.0, %v324
        %326 = vdwg.mxu0
        %v327 = vld [vmem:[%s229] sm:$0xff]
        %v328 = vadd.f32 %v323, %v325
        %329 = vadd.xlane.f32.xlu0 %v328
        %v330 = vpop.xlane.xlu0 %329
        %v331 = vadd.f32 %v327, %v330
        %vm332 = vcmask 7168
        %333 = vst.msk [vmem:[%s229] sm:$0xff] %vm332, %v331
        %v334 = vld [vmem:[%s233] sm:$0xff]
        %v335 = vmul.f32 %v323, %v323
        %v336 = vmul.f32 %v325, %v325
        %v337 = vadd.f32 %v335, %v336
        %338 = vadd.xlane.f32.xlu0 %v337
        %v339 = vpop.xlane.xlu0 %338
        %v340 = vadd.f32 %v334, %v339
        %341 = vst.msk [vmem:[%s233] sm:$0xff] %vm332, %v340
        %p342 = scmp.lt.s32.totalorder %s23, 0
        %s343 = scalar_select %p342, %s23, 0
        %s344 = smul.addr %s343, 8
        %s345 = scalar_lea.vmem %s2, %s344
        %p346 = scmp.lt.s32.totalorder %s23, 0
        %s347 = scalar_select %p346, %s23, 0
        %s348 = smul.addr %s347, 8
        %s349 = scalar_lea.vmem %s3, %s348
        // Predicated region
        $region37: #{tpu_custom_call.1} parent=27 // pred_check
          %p350 = pneg %p110
        $region38: #{tpu_custom_call.1} parent=27 // pred_check_branch
          %352 = sbr.rel (%p350) target = $region40
        $region39: #{tpu_custom_call.1} parent=27 // pred_region
          _
        $region40: #{tpu_custom_call.1} parent=27 // pred_fallthru
          _
        // Predicated region
        $region41: #{tpu_custom_call.1} parent=27 // pred_check
          %p353 = pneg %p136
        $region42: #{tpu_custom_call.1} parent=27 // pred_check_branch
          %355 = sbr.rel (%p353) target = $region44
        $region43: #{tpu_custom_call.1} parent=27 // pred_region
          _
        $region44: #{tpu_custom_call.1} parent=27 // pred_fallthru
          _
        // Predicated region
        $region45: #{tpu_custom_call.1} parent=27 // pred_check
          %p356 = pneg %p110
        $region46: #{tpu_custom_call.1} parent=27 // pred_check_branch
          %358 = sbr.rel (%p356) target = $region48
        $region47: #{tpu_custom_call.1} parent=27 // pred_region
          %p359 = scmp.lt.s32.totalorder %s23, 0
          %s360 = scalar_select %p359, %s23, 0
          %s361 = smul.addr %s360, 8
          %s362 = scalar_lea.vmem %s2, %s361
        $region48: #{tpu_custom_call.1} parent=27 // pred_fallthru
          _
        // Predicated region
        $region49: #{tpu_custom_call.1} parent=27 // pred_check
          %p363 = pneg %p136
        $region50: #{tpu_custom_call.1} parent=27 // pred_check_branch
          %365 = sbr.rel (%p363) target = $region52
        $region51: #{tpu_custom_call.1} parent=27 // pred_region
          %p366 = scmp.lt.s32.totalorder %s23, 0
          %s367 = scalar_select %p366, %s23, 0
          %s368 = smul.addr %s367, 8
          %s369 = scalar_lea.vmem %s3, %s368
        $region52: #{tpu_custom_call.1} parent=27 // pred_fallthru
          _
      $region28: #{tpu_custom_call.1} parent=5 // pred_fallthru
        _
      %p370 = scmp.le.s32.totalorder 2, %s13
      // Predicated region
      $region53: #{tpu_custom_call.1} parent=5 // pred_check
        %p371 = pneg %p370
      $region54: #{tpu_custom_call.1} parent=5 // pred_check_branch
        %373 = sbr.rel (%p371) target = $region56
      $region55: #{tpu_custom_call.1} parent=5 // pred_region
        %s374 = ssub.s32 %s13, 2
      $region56: #{tpu_custom_call.1} parent=5 // pred_fallthru
        _
    $region6: #{tpu_custom_call.1} parent=1 // loop_footer
      %s17 = sadd.s32 1, %s13
    $region7: #{tpu_custom_call.1} parent=1 // loop_footer_branch
      %12 = sbr.rel target = $region3
    $region8: #{tpu_custom_call.1} parent=1 // loop_exit
      _
    %375 = vsyncpa [#allocation3], 1
    %s376 = scalar_lea.sflag [#allocation3], 1
    %377 = vsyncpa %s376, 1

</llo_original>
